<compile_context>
chip_gen: v5e
topology: v5e:2x2
jax: 0.10.0
libtpu: 0.0.40
codegen_flags: <defaults>
</compile_context>

<pallas_src>
import functools

import jax
import jax.numpy as jnp
from jax import lax
from jax.experimental import pallas as pl
from jax.experimental.pallas import tpu as pltpu


def _fused_block_kernel(x_ref, t1_ref, t2_ref, sb_ref, o_ref, lhs_ref, *, NB, H, WC):
    """Fused BasicBlock forward for NB images.

    x_ref   : (NB*H, WC)   f32   lane-dense input rows (lane = w*Cin + ci)
    t1_ref  : (3*WC, WC)   bf16  conv1 row-Toeplitz weight, kh blocks stacked along K
    t2_ref  : (3*WC, WC)   bf16  conv2 row-Toeplitz weight
    sb_ref  : (4, WC)      f32   rows = [scale1, bias1, scale2, bias2] (folded BN, tiled over W)
    o_ref   : (NB*H, WC)   f32   output rows (lane = w*Cout + co), lane-dense
    lhs_ref : (NB*H, 3*WC) bf16  scratch: wide-K conv LHS, reused by conv1 and conv2
    """
    x_f32 = x_ref[...]                                    # (M, WC); also the residual

    # Zero the halo rows that encode the h=-1 / h=H zero padding.  These positions are
    # never touched by the interior stores in _fill below, and they are identical for
    # conv1 and conv2, so 2*NB single-row stores per grid step cover both convs.
    zrow = jnp.zeros((1, WC), lhs_ref.dtype)
    for b in range(NB):
        lhs_ref[b * H:b * H + 1, 0:WC] = zrow                        # kh=0 tap, output row h=0
        lhs_ref[(b + 1) * H - 1:(b + 1) * H, 2 * WC:3 * WC] = zrow   # kh=2 tap, output row h=H-1

    def _fill(vals):
        # vals: (M, WC) bf16.  Column block kh holds input row (h + kh - 1) of the same
        # image; out-of-image rows stay at the zeros written above (do NOT extend these
        # store ranges onto the halo rows).
        lhs_ref[:, WC:2 * WC] = vals                                 # kh=1: aligned full store
        for b in range(NB):                                          # static unroll, NB small
            lhs_ref[b * H + 1:(b + 1) * H, 0:WC] = vals[b * H:(b + 1) * H - 1, :]          # kh=0
            lhs_ref[b * H:(b + 1) * H - 1, 2 * WC:3 * WC] = vals[b * H + 1:(b + 1) * H, :]  # kh=2

    # ---- conv1 + bn1 + relu: one (M, 3*WC) @ (3*WC, WC) MXU matmul ----
    _fill(x_f32.astype(jnp.bfloat16))
    acc1 = jnp.dot(lhs_ref[...], t1_ref[...], preferred_element_type=jnp.float32)
    out1 = jnp.maximum(acc1 * sb_ref[0:1, :] + sb_ref[1:2, :], 0.0)

    # ---- conv2 + bn2 + residual + relu (intermediate never leaves VMEM/vregs) ----
    _fill(out1.astype(jnp.bfloat16))
    acc2 = jnp.dot(lhs_ref[...], t2_ref[...], preferred_element_type=jnp.float32)
    out2 = acc2 * sb_ref[2:3, :] + sb_ref[3:4, :]
    o_ref[...] = jnp.maximum(out2 + x_f32, 0.0).astype(o_ref.dtype)


def _make_row_toeplitz(w_hwio, W):
    """Fold kw taps of a 3x3 conv into a (W*Cin, W*Cout) matrix per kh.

    T[kh, p*Cin+ci, w*Cout+co] = w_hwio[kh, kw, ci, co] where kw = p - w + 1
    (zero if |p - w| > 1).  Out-of-image taps fall off the matrix, reproducing
    zero padding along W.
    """
    KH, KW, Cin, Cout = w_hwio.shape
    p = jnp.arange(W)[:, None, None]
    w = jnp.arange(W)[None, :, None]
    kw = jnp.arange(KW)[None, None, :]
    sel = (p == w + kw - 1).astype(w_hwio.dtype)              # (W, W, KW)
    T = jnp.einsum('pwk,hkio->hpiwo', sel, w_hwio)            # (KH, W, Cin, W, Cout)
    return T.reshape(KH, W * Cin, W * Cout)


def _fold_bn(gamma, beta, mean, var, eps=1e-5):
    scale = gamma / jnp.sqrt(var + eps)
    bias = beta - mean * scale
    return scale, bias


def _pick_block_batch(N, H, target_m=256):
    """Largest divisor of N with NB*H <= target_m (aim M >= 128/256 for MXU fill)."""
    nb = min(N, max(1, target_m // H))
    while N % nb:
        nb -= 1
    return nb


def basic_block_forward(x_nchw, params, *, block_batch=None):
    """BasicBlock forward (stride=1, downsample=None). Input/output are NCHW."""
    N, C, H, W = x_nchw.shape
    Cout = params["w1"].shape[-1]
    assert params["w1"].shape[2] == C and Cout == C, (
        "stride=1 / downsample=None BasicBlock requires inplanes == planes")
    # TODO(synk): stride>1 / downsample paths of BasicBlock are not implemented
    # (the module's default config does not use them).
    WC = W * C
    # Fail loudly instead of silently falling into masked / partial-lane layouts.
    assert WC % 128 == 0, "lane-dense layout requires W*C to be a multiple of 128"
    assert H >= 2 and H % 8 == 0, "row-shift layout assumes H >= 2 and H % 8 == 0"

    NB = _pick_block_batch(N, H) if block_batch is None else block_batch
    assert N % NB == 0
    M = NB * H

    # NCHW -> NHWC -> lane-dense rows (N*H, W*C); pure layout, no extra compute.
    x2d = jnp.transpose(x_nchw, (0, 2, 3, 1)).reshape(N * H, WC)

    s1, b1 = _fold_bn(params["bn1_gamma"], params["bn1_beta"],
                      params["bn1_mean"], params["bn1_var"])
    s2, b2 = _fold_bn(params["bn2_gamma"], params["bn2_beta"],
                      params["bn2_mean"], params["bn2_var"])
    sb = jnp.stack([jnp.tile(s1, W), jnp.tile(b1, W),
                    jnp.tile(s2, W), jnp.tile(b2, W)]).astype(jnp.float32)

    # Row-Toeplitz weights with the 3 kh blocks stacked along K -> one matmul per conv.
    t1 = _make_row_toeplitz(params["w1"], W).reshape(3 * WC, WC).astype(jnp.bfloat16)
    t2 = _make_row_toeplitz(params["w2"], W).reshape(3 * WC, WC).astype(jnp.bfloat16)

    kernel = functools.partial(_fused_block_kernel, NB=NB, H=H, WC=WC)

    out2d = pl.pallas_call(
        kernel,
        out_shape=jax.ShapeDtypeStruct((N * H, WC), x_nchw.dtype),
        grid=(N // NB,),
        in_specs=[
            pl.BlockSpec((M, WC), lambda n: (n, 0)),
            # Weights are constant across the grid.  NOTE: at real ResNet widths the
            # (W*C)^2 Toeplitz weights must be single-buffered / tiled over W (and
            # vmem_limit_bytes raised) to stay inside v7x's 64 MiB VMEM; negligible
            # at this channel count.
            pl.BlockSpec((3 * WC, WC), lambda n: (0, 0)),
            pl.BlockSpec((3 * WC, WC), lambda n: (0, 0)),
            pl.BlockSpec((4, WC), lambda n: (0, 0)),
        ],
        out_specs=pl.BlockSpec((M, WC), lambda n: (n, 0)),
        scratch_shapes=[pltpu.VMEM((M, 3 * WC), jnp.bfloat16)],
        compiler_params=pltpu.CompilerParams(
            dimension_semantics=("parallel",)),
    )(x2d, t1, t2, sb)

    return jnp.transpose(out2d.reshape(N, H, W, C), (0, 3, 1, 2))


def _reference_forward(x_nchw, params):
    """Pure-JAX f32 reference (lax conv) for a correctness check."""
    dn = lax.conv_dimension_numbers(x_nchw.shape, (3, 3, 1, 1), ("NCHW", "HWIO", "NCHW"))

    def conv(x, w_hwio):
        return lax.conv_general_dilated(x, w_hwio, (1, 1), ((1, 1), (1, 1)),
                                        dimension_numbers=dn)

    def bn(x, g, b, m, v, eps=1e-5):
        s = g / jnp.sqrt(v + eps)
        return x * s[None, :, None, None] + (b - m * s)[None, :, None, None]

    out = conv(x_nchw, params["w1"])
    out = jnp.maximum(bn(out, params["bn1_gamma"], params["bn1_beta"],
                         params["bn1_mean"], params["bn1_var"]), 0.0)
    out = conv(out, params["w2"])
    out = bn(out, params["bn2_gamma"], params["bn2_beta"],
             params["bn2_mean"], params["bn2_var"])
    return jnp.maximum(out + x_nchw, 0.0)


def make_params(key, inplanes, planes):
    ks = jax.random.split(key, 10)
    # conv weights in HWIO layout (PyTorch OIHW transposed to (3,3,I,O)).
    w1 = 0.1 * jax.random.normal(ks[0], (3, 3, inplanes, planes), jnp.float32)
    w2 = 0.1 * jax.random.normal(ks[1], (3, 3, planes, planes), jnp.float32)
    return {
        "w1": w1,
        "w2": w2,
        "bn1_gamma": 1.0 + 0.1 * jax.random.normal(ks[2], (planes,), jnp.float32),
        "bn1_beta": 0.1 * jax.random.normal(ks[3], (planes,), jnp.float32),
        "bn1_mean": 0.1 * jax.random.normal(ks[4], (planes,), jnp.float32),
        "bn1_var": jax.random.uniform(ks[5], (planes,), jnp.float32, 0.5, 1.5),
        "bn2_gamma": 1.0 + 0.1 * jax.random.normal(ks[6], (planes,), jnp.float32),
        "bn2_beta": 0.1 * jax.random.normal(ks[7], (planes,), jnp.float32),
        "bn2_mean": 0.1 * jax.random.normal(ks[8], (planes,), jnp.float32),
        "bn2_var": jax.random.uniform(ks[9], (planes,), jnp.float32, 0.5, 1.5),
    }


if __name__ == "__main__":
    # batch=2, inplanes=planes=8, spatial 16x16 -> W*C = 128 (fully lane-dense),
    # NB=2 images per grid step -> M = 32 rows per conv matmul, single grid step.
    N, C, H, W = 2, 8, 16, 16
    key = jax.random.PRNGKey(0)
    k_x, k_p = jax.random.split(key)
    x = jax.random.normal(k_x, (N, C, H, W), jnp.float32)
    params = make_params(k_p, C, C)

    out = jax.jit(basic_block_forward)(x, params)
    out = jax.block_until_ready(out)

    ref = _reference_forward(x, params)
    assert out.shape == (N, C, H, W)
    # bf16 MXU feed + bf16 intermediate (f32 accumulation) -> loosened, relative tol.
    err = float(jnp.max(jnp.abs(out - ref)))
    scale = float(jnp.max(jnp.abs(ref))) + 1e-6
    assert err / scale < 2e-2, f"mismatch vs reference: rel_err={err / scale:.3e}"

    print("KERNEL_OK")
</pallas_src>

<mosaic_0001>
module attributes {stable_mosaic.version = 11 : i64} {
  func.func @_fused_block_kernel(%arg0: i32, %arg1: memref<32x128xf32, #tpu.memory_space<vmem>>, %arg2: memref<384x128xbf16, #tpu.memory_space<vmem>>, %arg3: memref<384x128xbf16, #tpu.memory_space<vmem>>, %arg4: memref<4x128xf32, #tpu.memory_space<vmem>>, %arg5: memref<32x128xf32, #tpu.memory_space<vmem>>, %arg6: memref<32x384xbf16, #tpu.memory_space<vmem>>) attributes {dimension_semantics = [#tpu.dimension_semantics<parallel>], iteration_bounds = array<i64: 1>, scalar_prefetch = 0 : i64, scratch_operands = 1 : i64, tpu.core_type = #tpu.core_type<tc>, window_params = [{transform_indices = @transform_0, window_bounds = array<i64: 32, 128>}, {pipeline_mode = #tpu.pipeline_mode<synchronous>, transform_indices = @transform_1, window_bounds = array<i64: 384, 128>}, {pipeline_mode = #tpu.pipeline_mode<synchronous>, transform_indices = @transform_2, window_bounds = array<i64: 384, 128>}, {pipeline_mode = #tpu.pipeline_mode<synchronous>, transform_indices = @transform_3, window_bounds = array<i64: 4, 128>}, {transform_indices = @transform_4, window_bounds = array<i64: 32, 128>}]} {
    %c0 = arith.constant 0 : index
    %c0_0 = arith.constant 0 : index
    %0 = vector.load %arg1[%c0, %c0_0] : memref<32x128xf32, #tpu.memory_space<vmem>>, vector<32x128xf32>
    %cst = arith.constant 0.000000e+00 : bf16
    %1 = vector.broadcast %cst : bf16 to vector<1x128xbf16>
    %c0_1 = arith.constant 0 : index
    %c0_2 = arith.constant 0 : index
    %2 = vector.load %arg6[%c0_1, %c0_2] : memref<32x384xbf16, #tpu.memory_space<vmem>>, vector<1x128xbf16>
    tpu.vector_store %arg6[%c0_1, %c0_2], %1 {strides = array<i32>} : memref<32x384xbf16, #tpu.memory_space<vmem>>, vector<1x128xbf16>,
    %c15 = arith.constant 15 : index
    %c256 = arith.constant 256 : index
    %3 = vector.load %arg6[%c15, %c256] : memref<32x384xbf16, #tpu.memory_space<vmem>>, vector<1x128xbf16>
    tpu.vector_store %arg6[%c15, %c256], %1 {strides = array<i32>} : memref<32x384xbf16, #tpu.memory_space<vmem>>, vector<1x128xbf16>,
    %c16 = arith.constant 16 : index
    %c0_3 = arith.constant 0 : index
    %4 = vector.load %arg6[%c16, %c0_3] : memref<32x384xbf16, #tpu.memory_space<vmem>>, vector<1x128xbf16>
    tpu.vector_store %arg6[%c16, %c0_3], %1 {strides = array<i32>} : memref<32x384xbf16, #tpu.memory_space<vmem>>, vector<1x128xbf16>,
    %c31 = arith.constant 31 : index
    %c256_4 = arith.constant 256 : index
    %5 = vector.load %arg6[%c31, %c256_4] : memref<32x384xbf16, #tpu.memory_space<vmem>>, vector<1x128xbf16>
    tpu.vector_store %arg6[%c31, %c256_4], %1 {strides = array<i32>} : memref<32x384xbf16, #tpu.memory_space<vmem>>, vector<1x128xbf16>,
    %6 = arith.truncf %0 : vector<32x128xf32> to vector<32x128xbf16>
    %c0_5 = arith.constant 0 : index
    %c128 = arith.constant 128 : index
    %7 = vector.load %arg6[%c0_5, %c128] : memref<32x384xbf16, #tpu.memory_space<vmem>>, vector<32x128xbf16>
    tpu.vector_store %arg6[%c0_5, %c128], %6 {strides = array<i32>} : memref<32x384xbf16, #tpu.memory_space<vmem>>, vector<32x128xbf16>,
    %8 = vector.extract_strided_slice %6 {offsets = [0, 0], sizes = [15, 128], strides = [1, 1]} : vector<32x128xbf16> to vector<15x128xbf16>
    %c1 = arith.constant 1 : index
    %c0_6 = arith.constant 0 : index
    %9 = vector.load %arg6[%c1, %c0_6] : memref<32x384xbf16, #tpu.memory_space<vmem>>, vector<15x128xbf16>
    tpu.vector_store %arg6[%c1, %c0_6], %8 {strides = array<i32>} : memref<32x384xbf16, #tpu.memory_space<vmem>>, vector<15x128xbf16>,
    %10 = vector.extract_strided_slice %6 {offsets = [1, 0], sizes = [15, 128], strides = [1, 1]} : vector<32x128xbf16> to vector<15x128xbf16>
    %c0_7 = arith.constant 0 : index
    %c256_8 = arith.constant 256 : index
    %11 = vector.load %arg6[%c0_7, %c256_8] : memref<32x384xbf16, #tpu.memory_space<vmem>>, vector<15x128xbf16>
    tpu.vector_store %arg6[%c0_7, %c256_8], %10 {strides = array<i32>} : memref<32x384xbf16, #tpu.memory_space<vmem>>, vector<15x128xbf16>,
    %12 = vector.extract_strided_slice %6 {offsets = [16, 0], sizes = [15, 128], strides = [1, 1]} : vector<32x128xbf16> to vector<15x128xbf16>
    %c17 = arith.constant 17 : index
    %c0_9 = arith.constant 0 : index
    %13 = vector.load %arg6[%c17, %c0_9] : memref<32x384xbf16, #tpu.memory_space<vmem>>, vector<15x128xbf16>
    tpu.vector_store %arg6[%c17, %c0_9], %12 {strides = array<i32>} : memref<32x384xbf16, #tpu.memory_space<vmem>>, vector<15x128xbf16>,
    %14 = vector.extract_strided_slice %6 {offsets = [17, 0], sizes = [15, 128], strides = [1, 1]} : vector<32x128xbf16> to vector<15x128xbf16>
    %c16_10 = arith.constant 16 : index
    %c256_11 = arith.constant 256 : index
    %15 = vector.load %arg6[%c16_10, %c256_11] : memref<32x384xbf16, #tpu.memory_space<vmem>>, vector<15x128xbf16>
    tpu.vector_store %arg6[%c16_10, %c256_11], %14 {strides = array<i32>} : memref<32x384xbf16, #tpu.memory_space<vmem>>, vector<15x128xbf16>,
    %c0_12 = arith.constant 0 : index
    %c0_13 = arith.constant 0 : index
    %16 = vector.load %arg6[%c0_12, %c0_13] : memref<32x384xbf16, #tpu.memory_space<vmem>>, vector<32x384xbf16>
    %c0_14 = arith.constant 0 : index
    %c0_15 = arith.constant 0 : index
    %17 = vector.load %arg2[%c0_14, %c0_15] : memref<384x128xbf16, #tpu.memory_space<vmem>>, vector<384x128xbf16>
    %cst_16 = arith.constant dense<0.000000e+00> : vector<32x128xf32>
    %18 = tpu.matmul %16, %17, %cst_16 {dimension_numbers = #tpu.dot_dimension_numbers<[1], [0], [0], [1], [0, 0, 1, 1], [], []>} : vector<32x384xbf16>, vector<384x128xbf16>, vector<32x128xf32> -> vector<32x128xf32>
    %c0_17 = arith.constant 0 : index
    %c0_18 = arith.constant 0 : index
    %19 = vector.load %arg4[%c0_17, %c0_18] : memref<4x128xf32, #tpu.memory_space<vmem>>, vector<1x128xf32>
    %20 = vector.broadcast %19 : vector<1x128xf32> to vector<32x128xf32>
    %21 = arith.mulf %18, %20 : vector<32x128xf32>
    %c1_19 = arith.constant 1 : index
    %c0_20 = arith.constant 0 : index
    %22 = vector.load %arg4[%c1_19, %c0_20] : memref<4x128xf32, #tpu.memory_space<vmem>>, vector<1x128xf32>
    %23 = vector.broadcast %22 : vector<1x128xf32> to vector<32x128xf32>
    %24 = arith.addf %21, %23 : vector<32x128xf32>
    %cst_21 = arith.constant 0.000000e+00 : f32
    %25 = vector.broadcast %cst_21 : f32 to vector<32x128xf32>
    %26 = arith.maximumf %24, %25 : vector<32x128xf32>
    %27 = arith.truncf %26 : vector<32x128xf32> to vector<32x128xbf16>
    %c0_22 = arith.constant 0 : index
    %c128_23 = arith.constant 128 : index
    %28 = vector.load %arg6[%c0_22, %c128_23] : memref<32x384xbf16, #tpu.memory_space<vmem>>, vector<32x128xbf16>
    tpu.vector_store %arg6[%c0_22, %c128_23], %27 {strides = array<i32>} : memref<32x384xbf16, #tpu.memory_space<vmem>>, vector<32x128xbf16>,
    %29 = vector.extract_strided_slice %27 {offsets = [0, 0], sizes = [15, 128], strides = [1, 1]} : vector<32x128xbf16> to vector<15x128xbf16>
    %c1_24 = arith.constant 1 : index
    %c0_25 = arith.constant 0 : index
    %30 = vector.load %arg6[%c1_24, %c0_25] : memref<32x384xbf16, #tpu.memory_space<vmem>>, vector<15x128xbf16>
    tpu.vector_store %arg6[%c1_24, %c0_25], %29 {strides = array<i32>} : memref<32x384xbf16, #tpu.memory_space<vmem>>, vector<15x128xbf16>,
    %31 = vector.extract_strided_slice %27 {offsets = [1, 0], sizes = [15, 128], strides = [1, 1]} : vector<32x128xbf16> to vector<15x128xbf16>
    %c0_26 = arith.constant 0 : index
    %c256_27 = arith.constant 256 : index
    %32 = vector.load %arg6[%c0_26, %c256_27] : memref<32x384xbf16, #tpu.memory_space<vmem>>, vector<15x128xbf16>
    tpu.vector_store %arg6[%c0_26, %c256_27], %31 {strides = array<i32>} : memref<32x384xbf16, #tpu.memory_space<vmem>>, vector<15x128xbf16>,
    %33 = vector.extract_strided_slice %27 {offsets = [16, 0], sizes = [15, 128], strides = [1, 1]} : vector<32x128xbf16> to vector<15x128xbf16>
    %c17_28 = arith.constant 17 : index
    %c0_29 = arith.constant 0 : index
    %34 = vector.load %arg6[%c17_28, %c0_29] : memref<32x384xbf16, #tpu.memory_space<vmem>>, vector<15x128xbf16>
    tpu.vector_store %arg6[%c17_28, %c0_29], %33 {strides = array<i32>} : memref<32x384xbf16, #tpu.memory_space<vmem>>, vector<15x128xbf16>,
    %35 = vector.extract_strided_slice %27 {offsets = [17, 0], sizes = [15, 128], strides = [1, 1]} : vector<32x128xbf16> to vector<15x128xbf16>
    %c16_30 = arith.constant 16 : index
    %c256_31 = arith.constant 256 : index
    %36 = vector.load %arg6[%c16_30, %c256_31] : memref<32x384xbf16, #tpu.memory_space<vmem>>, vector<15x128xbf16>
    tpu.vector_store %arg6[%c16_30, %c256_31], %35 {strides = array<i32>} : memref<32x384xbf16, #tpu.memory_space<vmem>>, vector<15x128xbf16>,
    %c0_32 = arith.constant 0 : index
    %c0_33 = arith.constant 0 : index
    %37 = vector.load %arg6[%c0_32, %c0_33] : memref<32x384xbf16, #tpu.memory_space<vmem>>, vector<32x384xbf16>
    %c0_34 = arith.constant 0 : index
    %c0_35 = arith.constant 0 : index
    %38 = vector.load %arg3[%c0_34, %c0_35] : memref<384x128xbf16, #tpu.memory_space<vmem>>, vector<384x128xbf16>
    %cst_36 = arith.constant dense<0.000000e+00> : vector<32x128xf32>
    %39 = tpu.matmul %37, %38, %cst_36 {dimension_numbers = #tpu.dot_dimension_numbers<[1], [0], [0], [1], [0, 0, 1, 1], [], []>} : vector<32x384xbf16>, vector<384x128xbf16>, vector<32x128xf32> -> vector<32x128xf32>
    %c2 = arith.constant 2 : index
    %c0_37 = arith.constant 0 : index
    %40 = vector.load %arg4[%c2, %c0_37] : memref<4x128xf32, #tpu.memory_space<vmem>>, vector<1x128xf32>
    %41 = vector.broadcast %40 : vector<1x128xf32> to vector<32x128xf32>
    %42 = arith.mulf %39, %41 : vector<32x128xf32>
    %c3 = arith.constant 3 : index
    %c0_38 = arith.constant 0 : index
    %43 = vector.load %arg4[%c3, %c0_38] : memref<4x128xf32, #tpu.memory_space<vmem>>, vector<1x128xf32>
    %44 = vector.broadcast %43 : vector<1x128xf32> to vector<32x128xf32>
    %45 = arith.addf %42, %44 : vector<32x128xf32>
    %46 = arith.addf %45, %0 : vector<32x128xf32>
    %cst_39 = arith.constant 0.000000e+00 : f32
    %47 = vector.broadcast %cst_39 : f32 to vector<32x128xf32>
    %48 = arith.maximumf %46, %47 : vector<32x128xf32>
    %c0_40 = arith.constant 0 : index
    %c0_41 = arith.constant 0 : index
    %49 = vector.load %arg5[%c0_40, %c0_41] : memref<32x128xf32, #tpu.memory_space<vmem>>, vector<32x128xf32>
    tpu.vector_store %arg5[%c0_40, %c0_41], %48 {strides = array<i32>} : memref<32x128xf32, #tpu.memory_space<vmem>>, vector<32x128xf32>,
    return
  }
  func.func @transform_0(%arg0: i32) -> (i32, i32) {
    %c0_i32 = arith.constant 0 : i32
    %c0_i32_0 = arith.constant 0 : i32
    return %arg0, %c0_i32 : i32, i32
  }
  func.func @transform_1(%arg0: i32) -> (i32, i32) {
    %c0_i32 = arith.constant 0 : i32
    %c0_i32_0 = arith.constant 0 : i32
    %c0_i32_1 = arith.constant 0 : i32
    return %c0_i32, %c0_i32_0 : i32, i32
  }
  func.func @transform_2(%arg0: i32) -> (i32, i32) {
    %c0_i32 = arith.constant 0 : i32
    %c0_i32_0 = arith.constant 0 : i32
    %c0_i32_1 = arith.constant 0 : i32
    return %c0_i32, %c0_i32_0 : i32, i32
  }
  func.func @transform_3(%arg0: i32) -> (i32, i32) {
    %c0_i32 = arith.constant 0 : i32
    %c0_i32_0 = arith.constant 0 : i32
    %c0_i32_1 = arith.constant 0 : i32
    return %c0_i32, %c0_i32_0 : i32, i32
  }
  func.func @transform_4(%arg0: i32) -> (i32, i32) {
    %c0_i32 = arith.constant 0 : i32
    %c0_i32_0 = arith.constant 0 : i32
    return %arg0, %c0_i32 : i32, i32
  }
}

</mosaic_0001>

<llo_original>
// kernel: tile.36
$region0: #{tile.36}
  %s0 = inlined_call_operand.vmem [shape: f32[16,8], index: 0, kind: input, shape index: {}]
  %s1 = inlined_call_operand.vmem [shape: f32[1,128], index: 1, kind: output, shape index: {}]
  $region1: #{tile.36} parent=0
    #allocation0 [shape = 'u8[4096]{0}', space=vmem, size = 0x1000, scoped, tag = 'scoped mem for output reshape']
    %v2 = vld [vmem:[%s0] sm:$0x1]
    %vm3 = vcmask 64512
    %4 = vst.msk [vmem:[#allocation0] sm:$0x1] %vm3, %v2
    %s5 = scalar_lea.vmem %s0, 15
    %v6 = vld [vmem:[%s5] sm:$0x1]
    %7 = vrot.lane.b32.xlu0 %v6, 120
    %v8 = vpop.permute.xlu0 %7
    %vm9 = vcmask 1048512
    %10 = vst.msk [vmem:[#allocation0] sm:$0x1] %vm9, %v8
    %s11 = scalar_lea.vmem %s0, 14
    %v12 = vld [vmem:[%s11] sm:$0x1]
    %13 = vrot.lane.b32.xlu0 %v12, 112
    %v14 = vpop.permute.xlu0 %13
    %vm15 = vcmask 982912
    %16 = vst.msk [vmem:[#allocation0] sm:$0x1] %vm15, %v14
    %s17 = scalar_lea.vmem %s0, 13
    %v18 = vld [vmem:[%s17] sm:$0x1]
    %19 = vrot.lane.b32.xlu0 %v18, 104
    %v20 = vpop.permute.xlu0 %19
    %vm21 = vcmask 917312
    %22 = vst.msk [vmem:[#allocation0] sm:$0x1] %vm21, %v20
    %s23 = scalar_lea.vmem %s0, 12
    %v24 = vld [vmem:[%s23] sm:$0x1]
    %25 = vrot.lane.b32.xlu0 %v24, 96
    %v26 = vpop.permute.xlu0 %25
    %vm27 = vcmask 851712
    %28 = vst.msk [vmem:[#allocation0] sm:$0x1] %vm27, %v26
    %s29 = scalar_lea.vmem %s0, 11
    %v30 = vld [vmem:[%s29] sm:$0x1]
    %31 = vrot.lane.b32.xlu0 %v30, 88
    %v32 = vpop.permute.xlu0 %31
    %vm33 = vcmask 786112
    %34 = vst.msk [vmem:[#allocation0] sm:$0x1] %vm33, %v32
    %s35 = scalar_lea.vmem %s0, 10
    %v36 = vld [vmem:[%s35] sm:$0x1]
    %37 = vrot.lane.b32.xlu0 %v36, 80
    %v38 = vpop.permute.xlu0 %37
    %vm39 = vcmask 720512
    %40 = vst.msk [vmem:[#allocation0] sm:$0x1] %vm39, %v38
    %s41 = scalar_lea.vmem %s0, 9
    %v42 = vld [vmem:[%s41] sm:$0x1]
    %43 = vrot.lane.b32.xlu0 %v42, 72
    %v44 = vpop.permute.xlu0 %43
    %vm45 = vcmask 654912
    %46 = vst.msk [vmem:[#allocation0] sm:$0x1] %vm45, %v44
    %s47 = scalar_lea.vmem %s0, 8
    %v48 = vld [vmem:[%s47] sm:$0x1]
    %49 = vrot.lane.b32.xlu0 %v48, 64
    %v50 = vpop.permute.xlu0 %49
    %vm51 = vcmask 589312
    %52 = vst.msk [vmem:[#allocation0] sm:$0x1] %vm51, %v50
    %s53 = scalar_lea.vmem %s0, 7
    %v54 = vld [vmem:[%s53] sm:$0x1]
    %55 = vrot.lane.b32.xlu0 %v54, 56
    %v56 = vpop.permute.xlu0 %55
    %vm57 = vcmask 523712
    %58 = vst.msk [vmem:[#allocation0] sm:$0x1] %vm57, %v56
    %s59 = scalar_lea.vmem %s0, 6
    %v60 = vld [vmem:[%s59] sm:$0x1]
    %61 = vrot.lane.b32.xlu0 %v60, 48
    %v62 = vpop.permute.xlu0 %61
    %vm63 = vcmask 458112
    %64 = vst.msk [vmem:[#allocation0] sm:$0x1] %vm63, %v62
    %s65 = scalar_lea.vmem %s0, 5
    %v66 = vld [vmem:[%s65] sm:$0x1]
    %67 = vrot.lane.b32.xlu0 %v66, 40
    %v68 = vpop.permute.xlu0 %67
    %vm69 = vcmask 392512
    %70 = vst.msk [vmem:[#allocation0] sm:$0x1] %vm69, %v68
    %s71 = scalar_lea.vmem %s0, 4
    %v72 = vld [vmem:[%s71] sm:$0x1]
    %73 = vrot.lane.b32.xlu0 %v72, 32
    %v74 = vpop.permute.xlu0 %73
    %vm75 = vcmask 326912
    %76 = vst.msk [vmem:[#allocation0] sm:$0x1] %vm75, %v74
    %s77 = scalar_lea.vmem %s0, 3
    %v78 = vld [vmem:[%s77] sm:$0x1]
    %79 = vrot.lane.b32.xlu0 %v78, 24
    %v80 = vpop.permute.xlu0 %79
    %vm81 = vcmask 261312
    %82 = vst.msk [vmem:[#allocation0] sm:$0x1] %vm81, %v80
    %s83 = scalar_lea.vmem %s0, 2
    %v84 = vld [vmem:[%s83] sm:$0x1]
    %85 = vrot.lane.b32.xlu0 %v84, 16
    %v86 = vpop.permute.xlu0 %85
    %vm87 = vcmask 195712
    %88 = vst.msk [vmem:[#allocation0] sm:$0x1] %vm87, %v86
    %s89 = scalar_lea.vmem %s0, 1
    %v90 = vld [vmem:[%s89] sm:$0x1]
    %91 = vrot.lane.b32.xlu0 %v90, 8
    %v92 = vpop.permute.xlu0 %91
    %vm93 = vcmask 130112
    %94 = vst.msk [vmem:[#allocation0] sm:$0x1] %vm93, %v92
    %s96 = ssub.s32 2, 1
    %v97 = vld [vmem:[#allocation0] sm:%s96]
    %s99 = ssub.s32 2, 1
    %100 = vst [vmem:[%s1] sm:%s99] %v97

// kernel: tile.23
$region0: #{tile.23}
  #allocation0 [shape = 's32[1]{0}', space=sflag, size = 0x4, scoped, tag = 'scoped memory for tile.23']
  %s0 = inlined_call_operand.vmem [shape: f32[8], index: 0, kind: input, shape index: {}]
  %s1 = inlined_call_operand.vmem [shape: f32[16,8], index: 1, kind: output, shape index: {}]
  // Predicated region
  $region2: #{tile.23} parent=0 // pred_check
    _
  $region3: #{tile.23} parent=0 // pred_check_branch
    %3 = sbr.rel (0) target = $region5
  $region4: #{tile.23} parent=0 // pred_region
    _
  $region5: #{tile.23} parent=0 // pred_fallthru
    _
  %v4 = vld [vmem:[%s0] ss:$0 sm:$0xff]
  %5 = vst [vmem:[%s1] sm:$0xff] %v4
  %s6 = scalar_lea.vmem %s1, 8
  %7 = vst [vmem:[%s6] sm:$0xff] %v4

// kernel: basic_block_forward.1
$region0: #{basic_block_forward.1}
  #allocation0 [shape = 'u32[]', space=smem, size = 0x4, offset = 0x4, fixed_abs, tag = 'smem constant byte address 0x4 - core index']
  #allocation1 [shape = 'u32[72,128]{1,0:T(1,128)}', space=vmem, size = 0x9000, scoped, tag = 'internal scratch']
  #allocation2 [shape = 'bf16[32,384]{1,0:T(8,128)(2,1)}', space=vmem, size = 0x6000, scoped, tag = 'scratch operand']
  %s0 = inlined_call_operand.vmem [shape: f32[32,128], index: 0, kind: input, shape index: {}]
  %s1 = inlined_call_operand.vmem [shape: bf16[384,128], index: 1, kind: input, shape index: {}]
  %s2 = inlined_call_operand.vmem [shape: bf16[384,128], index: 2, kind: input, shape index: {}]
  %s3 = inlined_call_operand.vmem [shape: f32[4,128], index: 3, kind: input, shape index: {}]
  %s4 = inlined_call_operand.vmem [shape: f32[32,128], index: 4, kind: output, shape index: {}]
  %s5 = sld [smem:[#allocation0]]
  $region26: #{basic_block_forward.1} parent=0
    _
  %s7 = ssub.s32 1, %s5
  %s8 = scalar_select 0, %s7, %s5
  // Predicated region
  $region2: #{basic_block_forward.1} parent=0 // pred_check
    _
  $region3: #{basic_block_forward.1} parent=0 // pred_check_branch
    %10 = sbr.rel (0) target = $region5
  $region4: #{basic_block_forward.1} parent=0 // pred_region
    _
  $region5: #{basic_block_forward.1} parent=0 // pred_fallthru
    _
  // Predicated region
  $region6: #{basic_block_forward.1} parent=0 // pred_check
    _
  $region7: #{basic_block_forward.1} parent=0 // pred_check_branch
    %12 = sbr.rel (0) target = $region9
  $region8: #{basic_block_forward.1} parent=0 // pred_region
    _
  $region9: #{basic_block_forward.1} parent=0 // pred_fallthru
    _
  // Predicated region
  $region10: #{basic_block_forward.1} parent=0 // pred_check
    _
  $region11: #{basic_block_forward.1} parent=0 // pred_check_branch
    %14 = sbr.rel (0) target = $region13
  $region12: #{basic_block_forward.1} parent=0 // pred_region
    _
  $region13: #{basic_block_forward.1} parent=0 // pred_fallthru
    _
  // Predicated region
  $region14: #{basic_block_forward.1} parent=0 // pred_check
    _
  $region15: #{basic_block_forward.1} parent=0 // pred_check_branch
    %16 = sbr.rel (0) target = $region17
  $region16: #{basic_block_forward.1} parent=0 // pred_region
    _
  $region17: #{basic_block_forward.1} parent=0 // pred_fallthru
    _
  %v18 = vld [vmem:[%s0] sm:$0xff]
  %v19 = vld [vmem:[%s0 + $0x8] sm:$0xff]
  %v20 = vld [vmem:[%s0 + $0x10] sm:$0xff]
  %v21 = vld [vmem:[%s0 + $0x18] sm:$0xff]
  %vm22 = vcmask 1040384
  %vm23 = vsmask.f32 256
  %vm24 = vmand %vm22, %vm23
  %v25 = vld [vmem:[#allocation2] sm:$0x1]
  %v26 = vsel %vm24, 0, %v25
  %27 = vst [vmem:[#allocation2] sm:$0x1] %v26
  %vm28 = vcmask 1043459
  %vm29 = vsmask.f32 7950
  %vm30 = vmand %vm28, %vm29
  %v31 = vld [vmem:[#allocation2 + $0x14] sm:$0x8]
  %v32 = vsel %vm30, 0, %v31
  %33 = vst [vmem:[#allocation2 + $0x14] sm:$0x8] %v32
  %v34 = vld [vmem:[#allocation2 + $0x18] sm:$0x1]
  %v35 = vsel %vm24, 0, %v34
  %36 = vst [vmem:[#allocation2 + $0x18] sm:$0x1] %v35
  %v37 = vld [vmem:[#allocation2 + $0x2c] sm:$0x8]
  %v38 = vsel %vm30, 0, %v37
  %39 = vst [vmem:[#allocation2 + $0x2c] sm:$0x8] %v38
  %v40 = vpack.c.bf16 %v18, %v18
  %v41 = vpack.c.bf16 %v19, %v19
  %v42 = vpack.c.bf16 %v20, %v20
  %v43 = vpack.c.bf16 %v21, %v21
  %44 = vst [vmem:[#allocation2 + $0x4] sm:$0xf] %v40
  %45 = vst [vmem:[#allocation2 + $0x10] sm:$0xf] %v41
  %46 = vst [vmem:[#allocation2 + $0x1c] sm:$0xf] %v42
  %47 = vst [vmem:[#allocation2 + $0x28] sm:$0xf] %v43
  %vm48 = vsmask.f32 4368
  %vm49 = vmor %vm23, %vm48
  %v51 = vshrl.u32 %v40, 16
  %v53 = vrot.slane %v51, 7
  %v54 = vshll.u32 %v40, 16
  %v56 = vor.u32 %v53, %v54
  %v57 = vrot.slane %v53, 4
  %v59 = vshrl.u32 %v41, 16
  %v61 = vrot.slane %v59, 7
  %v62 = vshll.u32 %v41, 16
  %v64 = vor.u32 %v61, %v62
  %v65 = vsel %vm49, %v57, %v64
  %vm68 = vcmask 1043456
  %vm69 = vsmask.f32 7938
  %vm70 = vmand %vm68, %vm69
  %v71 = vld [vmem:[#allocation2] sm:$0xf]
  %v72 = vsel %vm70, %v56, %v71
  %73 = vst [vmem:[#allocation2] sm:$0xf] %v72
  %74 = vst [vmem:[#allocation2 + $0xc] sm:$0xf] %v65
  %vm75 = vsmask.f32 3328
  %vm76 = vsmask.f32 7440
  %vm77 = vmor %vm75, %vm76
  %v78 = vrot.slane %v51, 4
  %v79 = vrot.slane %v54, 5
  %v80 = vor.u32 %v78, %v79
  %v81 = vrot.slane %v80, 4
  %v82 = vrot.slane %v62, 5
  %v83 = vsel %vm77, %v81, %v82
  %v84 = vrot.slane %v59, 4
  %v85 = vor.u32 %v84, %v82
  %v86 = vrot.slane %v85, 4
  %89 = vst [vmem:[#allocation2 + $0x8] sm:$0xf] %v83
  %vm90 = vmand %vm68, %vm75
  %v91 = vld [vmem:[#allocation2 + $0x14] sm:$0xf]
  %v92 = vsel %vm90, %v86, %v91
  %93 = vst [vmem:[#allocation2 + $0x14] sm:$0xf] %v92
  %v95 = vshrl.u32 %v42, 16
  %v97 = vrot.slane %v95, 7
  %v98 = vshll.u32 %v42, 16
  %v100 = vor.u32 %v97, %v98
  %v101 = vrot.slane %v97, 4
  %v103 = vshrl.u32 %v43, 16
  %v105 = vrot.slane %v103, 7
  %v106 = vshll.u32 %v43, 16
  %v108 = vor.u32 %v105, %v106
  %v109 = vsel %vm49, %v101, %v108
  %v112 = vld [vmem:[#allocation2 + $0x18] sm:$0xf]
  %v113 = vsel %vm70, %v100, %v112
  %114 = vst [vmem:[#allocation2 + $0x18] sm:$0xf] %v113
  %115 = vst [vmem:[#allocation2 + $0x24] sm:$0xf] %v109
  %v116 = vrot.slane %v95, 4
  %v117 = vrot.slane %v98, 5
  %v118 = vor.u32 %v116, %v117
  %v119 = vrot.slane %v118, 4
  %v120 = vrot.slane %v106, 5
  %v121 = vsel %vm77, %v119, %v120
  %v122 = vrot.slane %v103, 4
  %v123 = vor.u32 %v122, %v120
  %v124 = vrot.slane %v123, 4
  %127 = vst [vmem:[#allocation2 + $0x20] sm:$0xf] %v121
  %v128 = vld [vmem:[#allocation2 + $0x2c] sm:$0xf]
  %v129 = vsel %vm90, %v124, %v128
  %130 = vst [vmem:[#allocation2 + $0x2c] sm:$0xf] %v129
  %v131 = vld [vmem:[#allocation2] sm:$0xff]
  %v132 = vld [vmem:[#allocation2 + $0x8] sm:$0xf]
  %v133 = vld [vmem:[#allocation2 + $0xc] sm:$0xff]
  %v134 = vld [vmem:[#allocation2 + $0x14] sm:$0xf]
  %v135 = vld [vmem:[#allocation2 + $0x18] sm:$0xff]
  %v136 = vld [vmem:[#allocation2 + $0x20] sm:$0xf]
  %v137 = vld [vmem:[#allocation2 + $0x24] sm:$0xff]
  %v138 = vld [vmem:[#allocation2 + $0x2c] sm:$0xf]
  %v139 = vld [vmem:[%s1] sm:$0xf]
  %v140 = vld [vmem:[%s1 + $0x4] sm:$0xf]
  %v141 = vld [vmem:[%s1 + $0x8] sm:$0xf]
  %v142 = vld [vmem:[%s1 + $0xc] sm:$0xf]
  %v143 = vld [vmem:[%s1 + $0x10] sm:$0xf]
  %v144 = vld [vmem:[%s1 + $0x14] sm:$0xf]
  %v145 = vld [vmem:[%s1 + $0x18] sm:$0xf]
  %v146 = vld [vmem:[%s1 + $0x1c] sm:$0xf]
  %v147 = vld [vmem:[%s1 + $0x20] sm:$0xf]
  %v148 = vld [vmem:[%s1 + $0x24] sm:$0xf]
  %v149 = vld [vmem:[%s1 + $0x28] sm:$0xf]
  %v150 = vld [vmem:[%s1 + $0x2c] sm:$0xf]
  %v151 = vld [vmem:[%s1 + $0x30] sm:$0xf]
  %v152 = vld [vmem:[%s1 + $0x34] sm:$0xf]
  %v153 = vld [vmem:[%s1 + $0x38] sm:$0xf]
  %v154 = vld [vmem:[%s1 + $0x3c] sm:$0xf]
  %v155 = vld [vmem:[%s1 + $0x40] sm:$0xf]
  %v156 = vld [vmem:[%s1 + $0x44] sm:$0xf]
  %v157 = vld [vmem:[%s1 + $0x48] sm:$0xf]
  %v158 = vld [vmem:[%s1 + $0x4c] sm:$0xf]
  %v159 = vld [vmem:[%s1 + $0x50] sm:$0xf]
  %v160 = vld [vmem:[%s1 + $0x54] sm:$0xf]
  %v161 = vld [vmem:[%s1 + $0x58] sm:$0xf]
  %v162 = vld [vmem:[%s1 + $0x5c] sm:$0xf]
  %v163 = vld [vmem:[%s1 + $0x60] sm:$0xf]
  %v164 = vld [vmem:[%s1 + $0x64] sm:$0xf]
  %v165 = vld [vmem:[%s1 + $0x68] sm:$0xf]
  %v166 = vld [vmem:[%s1 + $0x6c] sm:$0xf]
  %v167 = vld [vmem:[%s1 + $0x70] sm:$0xf]
  %v168 = vld [vmem:[%s1 + $0x74] sm:$0xf]
  %v169 = vld [vmem:[%s1 + $0x78] sm:$0xf]
  %v170 = vld [vmem:[%s1 + $0x7c] sm:$0xf]
  %v171 = vld [vmem:[%s1 + $0x80] sm:$0xf]
  %v172 = vld [vmem:[%s1 + $0x84] sm:$0xf]
  %v173 = vld [vmem:[%s1 + $0x88] sm:$0xf]
  %v174 = vld [vmem:[%s1 + $0x8c] sm:$0xf]
  %v175 = vld [vmem:[%s1 + $0x90] sm:$0xf]
  %v176 = vld [vmem:[%s1 + $0x94] sm:$0xf]
  %v177 = vld [vmem:[%s1 + $0x98] sm:$0xf]
  %v178 = vld [vmem:[%s1 + $0x9c] sm:$0xf]
  %v179 = vld [vmem:[%s1 + $0xa0] sm:$0xf]
  %v180 = vld [vmem:[%s1 + $0xa4] sm:$0xf]
  %v181 = vld [vmem:[%s1 + $0xa8] sm:$0xf]
  %v182 = vld [vmem:[%s1 + $0xac] sm:$0xf]
  %v183 = vld [vmem:[%s1 + $0xb0] sm:$0xf]
  %v184 = vld [vmem:[%s1 + $0xb4] sm:$0xf]
  %v185 = vld [vmem:[%s1 + $0xb8] sm:$0xf]
  %v186 = vld [vmem:[%s1 + $0xbc] sm:$0xf]
  %v195 = vunpack.c.l.b16 %v131
  %v196 = vunpack.c.h.b16 %v131
  %v197 = vunpack.c.l.b16 %v132
  %v198 = vunpack.c.l.b16 %v133
  %v199 = vunpack.c.h.b16 %v133
  %v200 = vunpack.c.l.b16 %v134
  %v201 = vunpack.c.l.b16 %v135
  %v202 = vunpack.c.h.b16 %v135
  %v203 = vunpack.c.l.b16 %v136
  %v204 = vunpack.c.l.b16 %v137
  %v205 = vunpack.c.h.b16 %v137
  %v206 = vunpack.c.l.b16 %v138
  %v207 = vpack.c.b16 %v198, %v195
  %v208 = vpack.c.b16 %v199, %v196
  %v209 = vpack.c.b16 %v200, %v197
  %v210 = vpack.c.b16 %v204, %v201
  %v211 = vpack.c.b16 %v205, %v202
  %v212 = vpack.c.b16 %v206, %v203
  %v267 = vunpack.c.l.b16 %v139
  %v268 = vunpack.c.l.b16 %v140
  %v269 = vunpack.c.l.b16 %v141
  %v270 = vunpack.c.l.b16 %v142
  %v271 = vunpack.c.l.b16 %v143
  %v272 = vunpack.c.l.b16 %v144
  %v273 = vunpack.c.l.b16 %v145
  %v274 = vunpack.c.l.b16 %v146
  %v275 = vunpack.c.l.b16 %v147
  %v276 = vunpack.c.l.b16 %v148
  %v277 = vunpack.c.l.b16 %v149
  %v278 = vunpack.c.l.b16 %v150
  %v279 = vunpack.c.l.b16 %v151
  %v280 = vunpack.c.l.b16 %v152
  %v281 = vunpack.c.l.b16 %v153
  %v282 = vunpack.c.l.b16 %v154
  %v283 = vunpack.c.l.b16 %v155
  %v284 = vunpack.c.l.b16 %v156
  %v285 = vunpack.c.l.b16 %v157
  %v286 = vunpack.c.l.b16 %v158
  %v287 = vunpack.c.l.b16 %v159
  %v288 = vunpack.c.l.b16 %v160
  %v289 = vunpack.c.l.b16 %v161
  %v290 = vunpack.c.l.b16 %v162
  %v291 = vunpack.c.l.b16 %v163
  %v292 = vunpack.c.l.b16 %v164
  %v293 = vunpack.c.l.b16 %v165
  %v294 = vunpack.c.l.b16 %v166
  %v295 = vunpack.c.l.b16 %v167
  %v296 = vunpack.c.l.b16 %v168
  %v297 = vunpack.c.l.b16 %v169
  %v298 = vunpack.c.l.b16 %v170
  %v299 = vunpack.c.l.b16 %v171
  %v300 = vunpack.c.l.b16 %v172
  %v301 = vunpack.c.l.b16 %v173
  %v302 = vunpack.c.l.b16 %v174
  %v303 = vunpack.c.l.b16 %v175
  %v304 = vunpack.c.l.b16 %v176
  %v305 = vunpack.c.l.b16 %v177
  %v306 = vunpack.c.l.b16 %v178
  %v307 = vunpack.c.l.b16 %v179
  %v308 = vunpack.c.l.b16 %v180
  %v309 = vunpack.c.l.b16 %v181
  %v310 = vunpack.c.l.b16 %v182
  %v311 = vunpack.c.l.b16 %v183
  %v312 = vunpack.c.l.b16 %v184
  %v313 = vunpack.c.l.b16 %v185
  %v314 = vunpack.c.l.b16 %v186
  %v315 = vpack.c.b16 %v268, %v267
  %v316 = vpack.c.b16 %v270, %v269
  %v317 = vpack.c.b16 %v272, %v271
  %v318 = vpack.c.b16 %v274, %v273
  %v319 = vpack.c.b16 %v276, %v275
  %v320 = vpack.c.b16 %v278, %v277
  %v321 = vpack.c.b16 %v280, %v279
  %v322 = vpack.c.b16 %v282, %v281
  %v323 = vpack.c.b16 %v284, %v283
  %v324 = vpack.c.b16 %v286, %v285
  %v325 = vpack.c.b16 %v288, %v287
  %v326 = vpack.c.b16 %v290, %v289
  %v327 = vpack.c.b16 %v292, %v291
  %v328 = vpack.c.b16 %v294, %v293
  %v329 = vpack.c.b16 %v296, %v295
  %v330 = vpack.c.b16 %v298, %v297
  %v331 = vpack.c.b16 %v300, %v299
  %v332 = vpack.c.b16 %v302, %v301
  %v333 = vpack.c.b16 %v304, %v303
  %v334 = vpack.c.b16 %v306, %v305
  %v335 = vpack.c.b16 %v308, %v307
  %v336 = vpack.c.b16 %v310, %v309
  %v337 = vpack.c.b16 %v312, %v311
  %v338 = vpack.c.b16 %v314, %v313
  %363 = vmatpush.bf16.msra.mxu0 %v322
  %364 = vmatpush.bf16.msra.mxu0 %v321
  %365 = vmatpush.bf16.msra.mxu0 %v320
  %366 = vmatpush.bf16.msra.mxu0 %v319
  %367 = vmatpush.bf16.msra.mxu0 %v318
  %368 = vmatpush.bf16.msra.mxu0 %v317
  %369 = vmatpush.bf16.msra.mxu0 %v316
  %370 = vmatpush.bf16.msra.mxu0 %v315
  %371 = vmatmul.bf16.gmra.mxu0 %v207
  %v372 = vpop.f32.mrf.mxu0
  %v373 = vadd.f32 0.0, %v372
  %v374 = vpop.f32.mrf.mxu0
  %v375 = vadd.f32 0.0, %v374
  %376 = vmatmul.bf16.gmra.mxu0 %v210
  %v377 = vpop.f32.mrf.mxu0
  %v378 = vadd.f32 0.0, %v377
  %v379 = vpop.f32.mrf.mxu0
  %v380 = vadd.f32 0.0, %v379
  %381 = vdwg.mxu0
  %382 = vmatpush.bf16.msra.mxu0 %v330
  %383 = vmatpush.bf16.msra.mxu0 %v329
  %384 = vmatpush.bf16.msra.mxu0 %v328
  %385 = vmatpush.bf16.msra.mxu0 %v327
  %386 = vmatpush.bf16.msra.mxu0 %v326
  %387 = vmatpush.bf16.msra.mxu0 %v325
  %388 = vmatpush.bf16.msra.mxu0 %v324
  %389 = vmatpush.bf16.msra.mxu0 %v323
  %390 = vmatmul.bf16.gmra.mxu0 %v208
  %v391 = vpop.f32.mrf.mxu0
  %v392 = vadd.f32 %v373, %v391
  %v393 = vpop.f32.mrf.mxu0
  %v394 = vadd.f32 %v375, %v393
  %395 = vmatmul.bf16.gmra.mxu0 %v211
  %v396 = vpop.f32.mrf.mxu0
  %v397 = vadd.f32 %v378, %v396
  %v398 = vpop.f32.mrf.mxu0
  %v399 = vadd.f32 %v380, %v398
  %400 = vdwg.mxu0
  %401 = vmatpush.bf16.msra.mxu0 %v338
  %402 = vmatpush.bf16.msra.mxu0 %v337
  %403 = vmatpush.bf16.msra.mxu0 %v336
  %404 = vmatpush.bf16.msra.mxu0 %v335
  %405 = vmatpush.bf16.msra.mxu0 %v334
  %406 = vmatpush.bf16.msra.mxu0 %v333
  %407 = vmatpush.bf16.msra.mxu0 %v332
  %408 = vmatpush.bf16.msra.mxu0 %v331
  %409 = vmatmul.bf16.gmra.mxu0 %v209
  %v410 = vpop.f32.mrf.mxu0
  %v411 = vadd.f32 %v392, %v410
  %v412 = vpop.f32.mrf.mxu0
  %v413 = vadd.f32 %v394, %v412
  %414 = vmatmul.bf16.gmra.mxu0 %v212
  %v415 = vpop.f32.mrf.mxu0
  %v416 = vadd.f32 %v397, %v415
  %v417 = vpop.f32.mrf.mxu0
  %v418 = vadd.f32 %v399, %v417
  %419 = vdwg.mxu0
  %v420 = vld [vmem:[%s3] sm:$0x1]
  %v421 = vperm.slane %v420, 0
  %v422 = vmul.f32 %v411, %v421
  %v423 = vmul.f32 %v413, %v421
  %v424 = vmul.f32 %v416, %v421
  %v425 = vmul.f32 %v418, %v421
  %v426 = vld [vmem:[%s3 + $0x1] sm:$0x1]
  %v427 = vperm.slane %v426, 0
  %v428 = vadd.f32 %v422, %v427
  %v429 = vadd.f32 %v423, %v427
  %v430 = vadd.f32 %v424, %v427
  %v431 = vadd.f32 %v425, %v427
  %v432 = vmax.f32 %v428, 0.0
  %v433 = vmax.f32 %v429, 0.0
  %v434 = vmax.f32 %v430, 0.0
  %v435 = vmax.f32 %v431, 0.0
  %v436 = vpack.c.bf16 %v432, %v432
  %v437 = vpack.c.bf16 %v433, %v433
  %v438 = vpack.c.bf16 %v434, %v434
  %v439 = vpack.c.bf16 %v435, %v435
  %440 = vst [vmem:[#allocation2 + $0x4] sm:$0xf] %v436
  %441 = vst [vmem:[#allocation2 + $0x10] sm:$0xf] %v437
  %442 = vst [vmem:[#allocation2 + $0x1c] sm:$0xf] %v438
  %443 = vst [vmem:[#allocation2 + $0x28] sm:$0xf] %v439
  %v445 = vshrl.u32 %v436, 16
  %v447 = vrot.slane %v445, 7
  %v448 = vshll.u32 %v436, 16
  %v450 = vor.u32 %v447, %v448
  %v451 = vrot.slane %v447, 4
  %v453 = vshrl.u32 %v437, 16
  %v455 = vrot.slane %v453, 7
  %v456 = vshll.u32 %v437, 16
  %v458 = vor.u32 %v455, %v456
  %v459 = vsel %vm49, %v451, %v458
  %v462 = vld [vmem:[#allocation2] sm:$0xf]
  %v463 = vsel %vm70, %v450, %v462
  %464 = vst [vmem:[#allocation2] sm:$0xf] %v463
  %465 = vst [vmem:[#allocation2 + $0xc] sm:$0xf] %v459
  %v466 = vrot.slane %v445, 4
  %v467 = vrot.slane %v448, 5
  %v468 = vor.u32 %v466, %v467
  %v469 = vrot.slane %v468, 4
  %v470 = vrot.slane %v456, 5
  %v471 = vsel %vm77, %v469, %v470
  %v472 = vrot.slane %v453, 4
  %v473 = vor.u32 %v472, %v470
  %v474 = vrot.slane %v473, 4
  %477 = vst [vmem:[#allocation2 + $0x8] sm:$0xf] %v471
  %v478 = vld [vmem:[#allocation2 + $0x14] sm:$0xf]
  %v479 = vsel %vm90, %v474, %v478
  %480 = vst [vmem:[#allocation2 + $0x14] sm:$0xf] %v479
  %v482 = vshrl.u32 %v438, 16
  %v484 = vrot.slane %v482, 7
  %v485 = vshll.u32 %v438, 16
  %v487 = vor.u32 %v484, %v485
  %v488 = vrot.slane %v484, 4
  %v490 = vshrl.u32 %v439, 16
  %v492 = vrot.slane %v490, 7
  %v493 = vshll.u32 %v439, 16
  %v495 = vor.u32 %v492, %v493
  %v496 = vsel %vm49, %v488, %v495
  %v499 = vld [vmem:[#allocation2 + $0x18] sm:$0xf]
  %v500 = vsel %vm70, %v487, %v499
  %501 = vst [vmem:[#allocation2 + $0x18] sm:$0xf] %v500
  %502 = vst [vmem:[#allocation2 + $0x24] sm:$0xf] %v496
  %v503 = vrot.slane %v482, 4
  %v504 = vrot.slane %v485, 5
  %v505 = vor.u32 %v503, %v504
  %v506 = vrot.slane %v505, 4
  %v507 = vrot.slane %v493, 5
  %v508 = vsel %vm77, %v506, %v507
  %v509 = vrot.slane %v490, 4
  %v510 = vor.u32 %v509, %v507
  %v511 = vrot.slane %v510, 4
  %514 = vst [vmem:[#allocation2 + $0x20] sm:$0xf] %v508
  %v515 = vld [vmem:[#allocation2 + $0x2c] sm:$0xf]
  %v516 = vsel %vm90, %v511, %v515
  %517 = vst [vmem:[#allocation2 + $0x2c] sm:$0xf] %v516
  %v518 = vld [vmem:[#allocation2] sm:$0xff]
  %v519 = vld [vmem:[#allocation2 + $0x8] sm:$0xf]
  %v520 = vld [vmem:[#allocation2 + $0xc] sm:$0xff]
  %v521 = vld [vmem:[#allocation2 + $0x14] sm:$0xf]
  %v522 = vld [vmem:[#allocation2 + $0x18] sm:$0xff]
  %v523 = vld [vmem:[#allocation2 + $0x20] sm:$0xf]
  %v524 = vld [vmem:[#allocation2 + $0x24] sm:$0xff]
  %v525 = vld [vmem:[#allocation2 + $0x2c] sm:$0xf]
  %v526 = vld [vmem:[%s2] sm:$0xf]
  %v527 = vld [vmem:[%s2 + $0x4] sm:$0xf]
  %v528 = vld [vmem:[%s2 + $0x8] sm:$0xf]
  %v529 = vld [vmem:[%s2 + $0xc] sm:$0xf]
  %v530 = vld [vmem:[%s2 + $0x10] sm:$0xf]
  %v531 = vld [vmem:[%s2 + $0x14] sm:$0xf]
  %v532 = vld [vmem:[%s2 + $0x18] sm:$0xf]
  %v533 = vld [vmem:[%s2 + $0x1c] sm:$0xf]
  %v534 = vld [vmem:[%s2 + $0x20] sm:$0xf]
  %v535 = vld [vmem:[%s2 + $0x24] sm:$0xf]
  %v536 = vld [vmem:[%s2 + $0x28] sm:$0xf]
  %v537 = vld [vmem:[%s2 + $0x2c] sm:$0xf]
  %v538 = vld [vmem:[%s2 + $0x30] sm:$0xf]
  %v539 = vld [vmem:[%s2 + $0x34] sm:$0xf]
  %v540 = vld [vmem:[%s2 + $0x38] sm:$0xf]
  %v541 = vld [vmem:[%s2 + $0x3c] sm:$0xf]
  %v542 = vld [vmem:[%s2 + $0x40] sm:$0xf]
  %v543 = vld [vmem:[%s2 + $0x44] sm:$0xf]
  %v544 = vld [vmem:[%s2 + $0x48] sm:$0xf]
  %v545 = vld [vmem:[%s2 + $0x4c] sm:$0xf]
  %v546 = vld [vmem:[%s2 + $0x50] sm:$0xf]
  %v547 = vld [vmem:[%s2 + $0x54] sm:$0xf]
  %v548 = vld [vmem:[%s2 + $0x58] sm:$0xf]
  %v549 = vld [vmem:[%s2 + $0x5c] sm:$0xf]
  %v550 = vld [vmem:[%s2 + $0x60] sm:$0xf]
  %v551 = vld [vmem:[%s2 + $0x64] sm:$0xf]
  %v552 = vld [vmem:[%s2 + $0x68] sm:$0xf]
  %v553 = vld [vmem:[%s2 + $0x6c] sm:$0xf]
  %v554 = vld [vmem:[%s2 + $0x70] sm:$0xf]
  %v555 = vld [vmem:[%s2 + $0x74] sm:$0xf]
  %v556 = vld [vmem:[%s2 + $0x78] sm:$0xf]
  %v557 = vld [vmem:[%s2 + $0x7c] sm:$0xf]
  %v558 = vld [vmem:[%s2 + $0x80] sm:$0xf]
  %v559 = vld [vmem:[%s2 + $0x84] sm:$0xf]
  %v560 = vld [vmem:[%s2 + $0x88] sm:$0xf]
  %v561 = vld [vmem:[%s2 + $0x8c] sm:$0xf]
  %v562 = vld [vmem:[%s2 + $0x90] sm:$0xf]
  %v563 = vld [vmem:[%s2 + $0x94] sm:$0xf]
  %v564 = vld [vmem:[%s2 + $0x98] sm:$0xf]
  %v565 = vld [vmem:[%s2 + $0x9c] sm:$0xf]
  %v566 = vld [vmem:[%s2 + $0xa0] sm:$0xf]
  %v567 = vld [vmem:[%s2 + $0xa4] sm:$0xf]
  %v568 = vld [vmem:[%s2 + $0xa8] sm:$0xf]
  %v569 = vld [vmem:[%s2 + $0xac] sm:$0xf]
  %v570 = vld [vmem:[%s2 + $0xb0] sm:$0xf]
  %v571 = vld [vmem:[%s2 + $0xb4] sm:$0xf]
  %v572 = vld [vmem:[%s2 + $0xb8] sm:$0xf]
  %v573 = vld [vmem:[%s2 + $0xbc] sm:$0xf]
  %v582 = vunpack.c.l.b16 %v518
  %v583 = vunpack.c.h.b16 %v518
  %v584 = vunpack.c.l.b16 %v519
  %v585 = vunpack.c.l.b16 %v520
  %v586 = vunpack.c.h.b16 %v520
  %v587 = vunpack.c.l.b16 %v521
  %v588 = vunpack.c.l.b16 %v522
  %v589 = vunpack.c.h.b16 %v522
  %v590 = vunpack.c.l.b16 %v523
  %v591 = vunpack.c.l.b16 %v524
  %v592 = vunpack.c.h.b16 %v524
  %v593 = vunpack.c.l.b16 %v525
  %v594 = vpack.c.b16 %v585, %v582
  %v595 = vpack.c.b16 %v586, %v583
  %v596 = vpack.c.b16 %v587, %v584
  %v597 = vpack.c.b16 %v591, %v588
  %v598 = vpack.c.b16 %v592, %v589
  %v599 = vpack.c.b16 %v593, %v590
  %v654 = vunpack.c.l.b16 %v526
  %v655 = vunpack.c.l.b16 %v527
  %v656 = vunpack.c.l.b16 %v528
  %v657 = vunpack.c.l.b16 %v529
  %v658 = vunpack.c.l.b16 %v530
  %v659 = vunpack.c.l.b16 %v531
  %v660 = vunpack.c.l.b16 %v532
  %v661 = vunpack.c.l.b16 %v533
  %v662 = vunpack.c.l.b16 %v534
  %v663 = vunpack.c.l.b16 %v535
  %v664 = vunpack.c.l.b16 %v536
  %v665 = vunpack.c.l.b16 %v537
  %v666 = vunpack.c.l.b16 %v538
  %v667 = vunpack.c.l.b16 %v539
  %v668 = vunpack.c.l.b16 %v540
  %v669 = vunpack.c.l.b16 %v541
  %v670 = vunpack.c.l.b16 %v542
  %v671 = vunpack.c.l.b16 %v543
  %v672 = vunpack.c.l.b16 %v544
  %v673 = vunpack.c.l.b16 %v545
  %v674 = vunpack.c.l.b16 %v546
  %v675 = vunpack.c.l.b16 %v547
  %v676 = vunpack.c.l.b16 %v548
  %v677 = vunpack.c.l.b16 %v549
  %v678 = vunpack.c.l.b16 %v550
  %v679 = vunpack.c.l.b16 %v551
  %v680 = vunpack.c.l.b16 %v552
  %v681 = vunpack.c.l.b16 %v553
  %v682 = vunpack.c.l.b16 %v554
  %v683 = vunpack.c.l.b16 %v555
  %v684 = vunpack.c.l.b16 %v556
  %v685 = vunpack.c.l.b16 %v557
  %v686 = vunpack.c.l.b16 %v558
  %v687 = vunpack.c.l.b16 %v559
  %v688 = vunpack.c.l.b16 %v560
  %v689 = vunpack.c.l.b16 %v561
  %v690 = vunpack.c.l.b16 %v562
  %v691 = vunpack.c.l.b16 %v563
  %v692 = vunpack.c.l.b16 %v564
  %v693 = vunpack.c.l.b16 %v565
  %v694 = vunpack.c.l.b16 %v566
  %v695 = vunpack.c.l.b16 %v567
  %v696 = vunpack.c.l.b16 %v568
  %v697 = vunpack.c.l.b16 %v569
  %v698 = vunpack.c.l.b16 %v570
  %v699 = vunpack.c.l.b16 %v571
  %v700 = vunpack.c.l.b16 %v572
  %v701 = vunpack.c.l.b16 %v573
  %v702 = vpack.c.b16 %v655, %v654
  %v703 = vpack.c.b16 %v657, %v656
  %v704 = vpack.c.b16 %v659, %v658
  %v705 = vpack.c.b16 %v661, %v660
  %v706 = vpack.c.b16 %v663, %v662
  %v707 = vpack.c.b16 %v665, %v664
  %v708 = vpack.c.b16 %v667, %v666
  %v709 = vpack.c.b16 %v669, %v668
  %v710 = vpack.c.b16 %v671, %v670
  %v711 = vpack.c.b16 %v673, %v672
  %v712 = vpack.c.b16 %v675, %v674
  %v713 = vpack.c.b16 %v677, %v676
  %v714 = vpack.c.b16 %v679, %v678
  %v715 = vpack.c.b16 %v681, %v680
  %v716 = vpack.c.b16 %v683, %v682
  %v717 = vpack.c.b16 %v685, %v684
  %v718 = vpack.c.b16 %v687, %v686
  %v719 = vpack.c.b16 %v689, %v688
  %v720 = vpack.c.b16 %v691, %v690
  %v721 = vpack.c.b16 %v693, %v692
  %v722 = vpack.c.b16 %v695, %v694
  %v723 = vpack.c.b16 %v697, %v696
  %v724 = vpack.c.b16 %v699, %v698
  %v725 = vpack.c.b16 %v701, %v700
  %750 = vmatpush.bf16.msra.mxu0 %v709
  %751 = vmatpush.bf16.msra.mxu0 %v708
  %752 = vmatpush.bf16.msra.mxu0 %v707
  %753 = vmatpush.bf16.msra.mxu0 %v706
  %754 = vmatpush.bf16.msra.mxu0 %v705
  %755 = vmatpush.bf16.msra.mxu0 %v704
  %756 = vmatpush.bf16.msra.mxu0 %v703
  %757 = vmatpush.bf16.msra.mxu0 %v702
  %758 = vmatmul.bf16.gmra.mxu0 %v594
  %v759 = vpop.f32.mrf.mxu0
  %v760 = vadd.f32 0.0, %v759
  %v761 = vpop.f32.mrf.mxu0
  %v762 = vadd.f32 0.0, %v761
  %763 = vmatmul.bf16.gmra.mxu0 %v597
  %v764 = vpop.f32.mrf.mxu0
  %v765 = vadd.f32 0.0, %v764
  %v766 = vpop.f32.mrf.mxu0
  %v767 = vadd.f32 0.0, %v766
  %768 = vdwg.mxu0
  %769 = vmatpush.bf16.msra.mxu0 %v717
  %770 = vmatpush.bf16.msra.mxu0 %v716
  %771 = vmatpush.bf16.msra.mxu0 %v715
  %772 = vmatpush.bf16.msra.mxu0 %v714
  %773 = vmatpush.bf16.msra.mxu0 %v713
  %774 = vmatpush.bf16.msra.mxu0 %v712
  %775 = vmatpush.bf16.msra.mxu0 %v711
  %776 = vmatpush.bf16.msra.mxu0 %v710
  %777 = vmatmul.bf16.gmra.mxu0 %v595
  %v778 = vpop.f32.mrf.mxu0
  %v779 = vadd.f32 %v760, %v778
  %v780 = vpop.f32.mrf.mxu0
  %v781 = vadd.f32 %v762, %v780
  %782 = vmatmul.bf16.gmra.mxu0 %v598
  %v783 = vpop.f32.mrf.mxu0
  %v784 = vadd.f32 %v765, %v783
  %v785 = vpop.f32.mrf.mxu0
  %v786 = vadd.f32 %v767, %v785
  %787 = vdwg.mxu0
  %788 = vmatpush.bf16.msra.mxu0 %v725
  %789 = vmatpush.bf16.msra.mxu0 %v724
  %790 = vmatpush.bf16.msra.mxu0 %v723
  %791 = vmatpush.bf16.msra.mxu0 %v722
  %792 = vmatpush.bf16.msra.mxu0 %v721
  %793 = vmatpush.bf16.msra.mxu0 %v720
  %794 = vmatpush.bf16.msra.mxu0 %v719
  %795 = vmatpush.bf16.msra.mxu0 %v718
  %796 = vmatmul.bf16.gmra.mxu0 %v596
  %v797 = vpop.f32.mrf.mxu0
  %v798 = vadd.f32 %v779, %v797
  %v799 = vpop.f32.mrf.mxu0
  %v800 = vadd.f32 %v781, %v799
  %801 = vmatmul.bf16.gmra.mxu0 %v599
  %v802 = vpop.f32.mrf.mxu0
  %v803 = vadd.f32 %v784, %v802
  %v804 = vpop.f32.mrf.mxu0
  %v805 = vadd.f32 %v786, %v804
  %806 = vdwg.mxu0
  %v807 = vld [vmem:[%s3 + $0x2] sm:$0x1]
  %v808 = vperm.slane %v807, 0
  %v809 = vmul.f32 %v798, %v808
  %v810 = vmul.f32 %v800, %v808
  %v811 = vmul.f32 %v803, %v808
  %v812 = vmul.f32 %v805, %v808
  %v813 = vld [vmem:[%s3 + $0x3] sm:$0x1]
  %v814 = vperm.slane %v813, 0
  %v815 = vadd.f32 %v809, %v814
  %v816 = vadd.f32 %v810, %v814
  %v817 = vadd.f32 %v811, %v814
  %v818 = vadd.f32 %v812, %v814
  %v819 = vadd.f32 %v815, %v18
  %v820 = vadd.f32 %v816, %v19
  %v821 = vadd.f32 %v817, %v20
  %v822 = vadd.f32 %v818, %v21
  %v823 = vmax.f32 %v819, 0.0
  %v824 = vmax.f32 %v820, 0.0
  %v825 = vmax.f32 %v821, 0.0
  %v826 = vmax.f32 %v822, 0.0
  %827 = vst [vmem:[%s4] sm:$0xff] %v823
  %828 = vst [vmem:[%s4 + $0x8] sm:$0xff] %v824
  %829 = vst [vmem:[%s4 + $0x10] sm:$0xff] %v825
  %830 = vst [vmem:[%s4 + $0x18] sm:$0xff] %v826
  // Predicated region
  $region18: #{basic_block_forward.1} parent=0 // pred_check
    _
  $region19: #{basic_block_forward.1} parent=0 // pred_check_branch
    %832 = sbr.rel (0) target = $region21
  $region20: #{basic_block_forward.1} parent=0 // pred_region
    _
  $region21: #{basic_block_forward.1} parent=0 // pred_fallthru
    _
  // Predicated region
  $region22: #{basic_block_forward.1} parent=0 // pred_check
    _
  $region23: #{basic_block_forward.1} parent=0 // pred_check_branch
    %834 = sbr.rel (0) target = $region25
  $region24: #{basic_block_forward.1} parent=0 // pred_region
    _
  $region25: #{basic_block_forward.1} parent=0 // pred_fallthru
    _

</llo_original>
